<compile_context>
chip_gen: v7x
topology: tpu7x:2x2x1
jax: 0.10.0
libtpu: 0.0.40
codegen_flags: <defaults>
</compile_context>

<pallas_src>
import jax
import jax.numpy as jnp
from jax import lax
from jax.experimental import pallas as pl
from jax.experimental.pallas import tpu as pltpu

GAME_BOARD_SIZE = 8
IN_DIM = GAME_BOARD_SIZE * GAME_BOARD_SIZE   # 64
H1 = IN_DIM                                   # 64
H2 = IN_DIM                                   # 64
H3 = 16
H3_PAD = 32          # per-block fc3 padding -> packed fc3 slab is lane-dense
OUT_DIM = 4
PACK = 4             # batch rows packed per lane-row (K=N=256 fills the MXU)


def _round_up(a, m):
    return ((a + m - 1) // m) * m


def _mlp_kernel(x_ref,
                w1_ref, b1_ref,
                w2_ref, b2_ref,
                w3_ref, b3_ref,
                w4t_ref, b4_ref,
                o_ref):
    """Forward pass for one (tile, 64*P) packed-batch tile, entirely in VMEM."""
    # f32 -> bf16 cast done in-kernel (cheap VALU op, hidden under MXU work).
    x = x_ref[...].astype(jnp.bfloat16)                       # (T, 64P)

    h = jnp.dot(x, w1_ref[...],
                preferred_element_type=jnp.float32) + b1_ref[...]
    h = jnp.maximum(h, 0.0)

    h = jnp.dot(h.astype(jnp.bfloat16), w2_ref[...],
                preferred_element_type=jnp.float32) + b2_ref[...]
    h = jnp.maximum(h, 0.0)

    h = jnp.dot(h.astype(jnp.bfloat16), w3_ref[...],
                preferred_element_type=jnp.float32) + b3_ref[...]
    h = jnp.maximum(h, 0.0)                                    # (T, 32P) lane-dense

    # fc4 computed transposed: contract the 32P dim of w4t (4P, 32P) with the
    # last dim of h (T, 32P) -> z (4P, T).  Lane-dense epilogue + unmasked
    # stores to a (4P, padded_Bp) output slab.
    z = lax.dot_general(w4t_ref[...], h.astype(jnp.bfloat16),
                        dimension_numbers=(((1,), (1,)), ((), ())),
                        preferred_element_type=jnp.float32) + b4_ref[...]
    # sigmoid(z) == 0.5*tanh(0.5*z) + 0.5 : single EUP transcendental per vreg.
    o_ref[...] = (0.5 * jnp.tanh(0.5 * z) + 0.5).astype(o_ref.dtype)


@jax.jit
def simple_nn_forward(x, params):
    """x: (B, 64) float32; params: block-diagonal packed bf16 weights / f32
    biases from init_params.  Returns (B, 4) float32."""
    B = x.shape[0]
    P = params["w1"].shape[0] // IN_DIM        # pack factor baked into weights
    kin = P * IN_DIM                           # packed input width  (256)
    kh3 = P * H3_PAD                           # packed fc3 width    (128)
    nout = P * OUT_DIM                         # packed output rows  (16)

    bp_total = pl.cdiv(B, P)                   # packed rows needed
    if bp_total <= 256:
        tile = _round_up(bp_total, 8)          # single grid step; block == array
    else:
        # >=2 grid steps (keeps both v7x TensorCores busy); 128-lane aligned
        # tiles so the transposed output block satisfies the (8,128) rule.
        tile = min(512, _round_up(pl.cdiv(bp_total, 2), 128))
    padded_bp = tile * pl.cdiv(bp_total, tile)

    pad_rows = padded_bp * P - B
    if pad_rows:
        x = jnp.pad(x, ((0, pad_rows), (0, 0)))
    xp = x.reshape(padded_bp, kin)             # free row-major reshape (f32)

    grid = (padded_bp // tile,)

    def wspec(shape):                          # weights stay resident in VMEM
        return pl.BlockSpec(shape, lambda i: (0, 0))

    out_t = pl.pallas_call(
        _mlp_kernel,
        out_shape=jax.ShapeDtypeStruct((nout, padded_bp), jnp.float32),
        grid=grid,
        in_specs=[
            pl.BlockSpec((tile, kin), lambda i: (i, 0)),   # packed x tile
            wspec((kin, kin)), wspec((1, kin)),            # fc1 (blockdiag)
            wspec((kin, kin)), wspec((1, kin)),            # fc2 (blockdiag)
            wspec((kin, kh3)), wspec((1, kh3)),            # fc3 (blockdiag+pad)
            wspec((nout, kh3)), wspec((nout, 1)),          # fc4^T (blockdiag+pad)
        ],
        out_specs=pl.BlockSpec((nout, tile), lambda i: (0, i)),
        compiler_params=pltpu.CompilerParams(
            dimension_semantics=("parallel",)),
    )(xp,
      params["w1"], params["b1"],
      params["w2"], params["b2"],
      params["w3"], params["b3"],
      params["w4t"], params["b4"])

    # (4P, padded_Bp) -> (padded_Bp, 4P) -> (padded_Bp*P, 4) -> real rows.
    out = out_t.T.reshape(padded_bp * P, OUT_DIM)[:B]
    return out


def init_params(key, pack=PACK):
    """PyTorch-style init U(-1/sqrt(fan_in), 1/sqrt(fan_in)).

    Returns (kernel_params, ref_params).  Kernel weights are stored (in, out),
    cast to bf16, and made block-diagonal over `pack` packed batch rows.
    fc3/fc4 are padded per block from 16 to 32 lanes (zeros), which is exact:
    padded columns stay 0 through relu and contribute 0 to fc4.
    """
    def linear_init(k, fan_in, fan_out):
        kw, kb = jax.random.split(k)
        bound = 1.0 / jnp.sqrt(jnp.float32(fan_in))
        w = jax.random.uniform(kw, (fan_in, fan_out), jnp.float32, -bound, bound)
        b = jax.random.uniform(kb, (1, fan_out), jnp.float32, -bound, bound)
        return w, b

    k1, k2, k3, k4 = jax.random.split(key, 4)
    w1, b1 = linear_init(k1, IN_DIM, H1)
    w2, b2 = linear_init(k2, H1, H2)
    w3, b3 = linear_init(k3, H2, H3)
    w4, b4 = linear_init(k4, H3, OUT_DIM)

    ref_params = dict(w1=w1, b1=b1, w2=w2, b2=b2, w3=w3, b3=b3, w4=w4, b4=b4)

    def bd(w):                                   # block-diagonal of `pack` copies
        return jax.scipy.linalg.block_diag(*([w] * pack))

    w3_pad = jnp.pad(w3, ((0, 0), (0, H3_PAD - H3)))        # (64, 32)
    b3_pad = jnp.pad(b3, ((0, 0), (0, H3_PAD - H3)))        # (1, 32)
    w4t_pad = jnp.pad(w4.T, ((0, 0), (0, H3_PAD - H3)))     # (4, 32), transposed

    kernel_params = dict(
        w1=bd(w1).astype(jnp.bfloat16),      b1=jnp.tile(b1, (1, pack)),
        w2=bd(w2).astype(jnp.bfloat16),      b2=jnp.tile(b2, (1, pack)),
        w3=bd(w3_pad).astype(jnp.bfloat16),  b3=jnp.tile(b3_pad, (1, pack)),
        w4t=bd(w4t_pad).astype(jnp.bfloat16),
        b4=jnp.tile(b4.reshape(OUT_DIM, 1), (pack, 1)),      # (4P, 1)
    )
    return kernel_params, ref_params


def reference_forward(x, ref):
    """Pure-JAX reference on the original (un-packed) weights, with the same
    bf16 quantization of x and the weights that the kernel applies."""
    q = lambda a: a.astype(jnp.bfloat16).astype(jnp.float32)
    h = jnp.maximum(q(x) @ q(ref["w1"]) + ref["b1"], 0.0)
    h = jnp.maximum(h @ q(ref["w2"]) + ref["b2"], 0.0)
    h = jnp.maximum(h @ q(ref["w3"]) + ref["b3"], 0.0)
    return jax.nn.sigmoid(h @ q(ref["w4"]) + ref["b4"])


if __name__ == "__main__":
    key = jax.random.PRNGKey(0)
    kp, kx = jax.random.split(key)

    params, ref_params = init_params(kp)
    batch = 8  # small demo batch; wrapper pads/packs it up to one tile
    x = jax.random.normal(kx, (batch, IN_DIM), dtype=jnp.float32)

    out = simple_nn_forward(x, params)
    out = jax.block_until_ready(out)

    ref = reference_forward(x, ref_params)
    assert out.shape == (batch, OUT_DIM)
    # Tolerance covers bf16 rounding of activations fed to the MXU.
    assert jnp.allclose(out, ref, atol=2e-2, rtol=2e-2), \
        float(jnp.max(jnp.abs(out - ref)))

    print("KERNEL_OK")
</pallas_src>

<mosaic_0001>
module attributes {stable_mosaic.version = 11 : i64} {
  func.func @_mlp_kernel(%arg0: i32, %arg1: memref<8x256xf32, #tpu.memory_space<vmem>>, %arg2: memref<256x256xbf16, #tpu.memory_space<vmem>>, %arg3: memref<1x256xf32, #tpu.memory_space<vmem>>, %arg4: memref<256x256xbf16, #tpu.memory_space<vmem>>, %arg5: memref<1x256xf32, #tpu.memory_space<vmem>>, %arg6: memref<256x128xbf16, #tpu.memory_space<vmem>>, %arg7: memref<1x128xf32, #tpu.memory_space<vmem>>, %arg8: memref<16x128xbf16, #tpu.memory_space<vmem>>, %arg9: memref<16x1xf32, #tpu.memory_space<vmem>>, %arg10: memref<16x8xf32, #tpu.memory_space<vmem>>) attributes {dimension_semantics = [#tpu.dimension_semantics<parallel>], iteration_bounds = array<i64: 1>, scalar_prefetch = 0 : i64, scratch_operands = 0 : i64, tpu.core_type = #tpu.core_type<tc>, window_params = [{transform_indices = @transform_0, window_bounds = array<i64: 8, 256>}, {pipeline_mode = #tpu.pipeline_mode<synchronous>, transform_indices = @transform_1, window_bounds = array<i64: 256, 256>}, {pipeline_mode = #tpu.pipeline_mode<synchronous>, transform_indices = @transform_2, window_bounds = array<i64: 1, 256>}, {pipeline_mode = #tpu.pipeline_mode<synchronous>, transform_indices = @transform_3, window_bounds = array<i64: 256, 256>}, {pipeline_mode = #tpu.pipeline_mode<synchronous>, transform_indices = @transform_4, window_bounds = array<i64: 1, 256>}, {pipeline_mode = #tpu.pipeline_mode<synchronous>, transform_indices = @transform_5, window_bounds = array<i64: 256, 128>}, {pipeline_mode = #tpu.pipeline_mode<synchronous>, transform_indices = @transform_6, window_bounds = array<i64: 1, 128>}, {pipeline_mode = #tpu.pipeline_mode<synchronous>, transform_indices = @transform_7, window_bounds = array<i64: 16, 128>}, {pipeline_mode = #tpu.pipeline_mode<synchronous>, transform_indices = @transform_8, window_bounds = array<i64: 16, 1>}, {transform_indices = @transform_9, window_bounds = array<i64: 16, 8>}]} {
    %c0 = arith.constant 0 : index
    %c0_0 = arith.constant 0 : index
    %0 = vector.load %arg1[%c0, %c0_0] : memref<8x256xf32, #tpu.memory_space<vmem>>, vector<8x256xf32>
    %1 = arith.truncf %0 : vector<8x256xf32> to vector<8x256xbf16>
    %c0_1 = arith.constant 0 : index
    %c0_2 = arith.constant 0 : index
    %2 = vector.load %arg2[%c0_1, %c0_2] : memref<256x256xbf16, #tpu.memory_space<vmem>>, vector<256x256xbf16>
    %cst = arith.constant dense<0.000000e+00> : vector<8x256xf32>
    %3 = tpu.matmul %1, %2, %cst {dimension_numbers = #tpu.dot_dimension_numbers<[1], [0], [0], [1], [0, 0, 1, 1], [], []>} : vector<8x256xbf16>, vector<256x256xbf16>, vector<8x256xf32> -> vector<8x256xf32>
    %c0_3 = arith.constant 0 : index
    %c0_4 = arith.constant 0 : index
    %4 = vector.load %arg3[%c0_3, %c0_4] : memref<1x256xf32, #tpu.memory_space<vmem>>, vector<1x256xf32>
    %5 = vector.broadcast %4 : vector<1x256xf32> to vector<8x256xf32>
    %6 = arith.addf %3, %5 : vector<8x256xf32>
    %cst_5 = arith.constant 0.000000e+00 : f32
    %7 = vector.broadcast %cst_5 : f32 to vector<8x256xf32>
    %8 = arith.maximumf %6, %7 : vector<8x256xf32>
    %9 = arith.truncf %8 : vector<8x256xf32> to vector<8x256xbf16>
    %c0_6 = arith.constant 0 : index
    %c0_7 = arith.constant 0 : index
    %10 = vector.load %arg4[%c0_6, %c0_7] : memref<256x256xbf16, #tpu.memory_space<vmem>>, vector<256x256xbf16>
    %cst_8 = arith.constant dense<0.000000e+00> : vector<8x256xf32>
    %11 = tpu.matmul %9, %10, %cst_8 {dimension_numbers = #tpu.dot_dimension_numbers<[1], [0], [0], [1], [0, 0, 1, 1], [], []>} : vector<8x256xbf16>, vector<256x256xbf16>, vector<8x256xf32> -> vector<8x256xf32>
    %c0_9 = arith.constant 0 : index
    %c0_10 = arith.constant 0 : index
    %12 = vector.load %arg5[%c0_9, %c0_10] : memref<1x256xf32, #tpu.memory_space<vmem>>, vector<1x256xf32>
    %13 = vector.broadcast %12 : vector<1x256xf32> to vector<8x256xf32>
    %14 = arith.addf %11, %13 : vector<8x256xf32>
    %cst_11 = arith.constant 0.000000e+00 : f32
    %15 = vector.broadcast %cst_11 : f32 to vector<8x256xf32>
    %16 = arith.maximumf %14, %15 : vector<8x256xf32>
    %17 = arith.truncf %16 : vector<8x256xf32> to vector<8x256xbf16>
    %c0_12 = arith.constant 0 : index
    %c0_13 = arith.constant 0 : index
    %18 = vector.load %arg6[%c0_12, %c0_13] : memref<256x128xbf16, #tpu.memory_space<vmem>>, vector<256x128xbf16>
    %cst_14 = arith.constant dense<0.000000e+00> : vector<8x128xf32>
    %19 = tpu.matmul %17, %18, %cst_14 {dimension_numbers = #tpu.dot_dimension_numbers<[1], [0], [0], [1], [0, 0, 1, 1], [], []>} : vector<8x256xbf16>, vector<256x128xbf16>, vector<8x128xf32> -> vector<8x128xf32>
    %c0_15 = arith.constant 0 : index
    %c0_16 = arith.constant 0 : index
    %20 = vector.load %arg7[%c0_15, %c0_16] : memref<1x128xf32, #tpu.memory_space<vmem>>, vector<1x128xf32>
    %21 = vector.broadcast %20 : vector<1x128xf32> to vector<8x128xf32>
    %22 = arith.addf %19, %21 : vector<8x128xf32>
    %cst_17 = arith.constant 0.000000e+00 : f32
    %23 = vector.broadcast %cst_17 : f32 to vector<8x128xf32>
    %24 = arith.maximumf %22, %23 : vector<8x128xf32>
    %c0_18 = arith.constant 0 : index
    %c0_19 = arith.constant 0 : index
    %25 = vector.load %arg8[%c0_18, %c0_19] : memref<16x128xbf16, #tpu.memory_space<vmem>>, vector<16x128xbf16>
    %26 = arith.truncf %24 : vector<8x128xf32> to vector<8x128xbf16>
    %cst_20 = arith.constant dense<0.000000e+00> : vector<16x8xf32>
    %27 = tpu.matmul %25, %26, %cst_20 {dimension_numbers = #tpu.dot_dimension_numbers<[1], [1], [0], [0], [0, 0, 1, 0], [], []>} : vector<16x128xbf16>, vector<8x128xbf16>, vector<16x8xf32> -> vector<16x8xf32>
    %c0_21 = arith.constant 0 : index
    %c0_22 = arith.constant 0 : index
    %28 = vector.load %arg9[%c0_21, %c0_22] : memref<16x1xf32, #tpu.memory_space<vmem>>, vector<16x1xf32>
    %29 = vector.broadcast %28 : vector<16x1xf32> to vector<16x8xf32>
    %30 = arith.addf %27, %29 : vector<16x8xf32>
    %cst_23 = arith.constant 5.000000e-01 : f32
    %31 = vector.broadcast %cst_23 : f32 to vector<16x8xf32>
    %32 = arith.mulf %31, %30 : vector<16x8xf32>
    %33 = math.tanh %32 : vector<16x8xf32>
    %cst_24 = arith.constant 5.000000e-01 : f32
    %34 = vector.broadcast %cst_24 : f32 to vector<16x8xf32>
    %35 = arith.mulf %34, %33 : vector<16x8xf32>
    %cst_25 = arith.constant 5.000000e-01 : f32
    %36 = vector.broadcast %cst_25 : f32 to vector<16x8xf32>
    %37 = arith.addf %35, %36 : vector<16x8xf32>
    %c0_26 = arith.constant 0 : index
    %c0_27 = arith.constant 0 : index
    %38 = vector.load %arg10[%c0_26, %c0_27] : memref<16x8xf32, #tpu.memory_space<vmem>>, vector<16x8xf32>
    tpu.vector_store %arg10[%c0_26, %c0_27], %37 {strides = array<i32>} : memref<16x8xf32, #tpu.memory_space<vmem>>, vector<16x8xf32>,
    return
  }
  func.func @transform_0(%arg0: i32) -> (i32, i32) {
    %c0_i32 = arith.constant 0 : i32
    %c0_i32_0 = arith.constant 0 : i32
    return %arg0, %c0_i32 : i32, i32
  }
  func.func @transform_1(%arg0: i32) -> (i32, i32) {
    %c0_i32 = arith.constant 0 : i32
    %c0_i32_0 = arith.constant 0 : i32
    %c0_i32_1 = arith.constant 0 : i32
    return %c0_i32, %c0_i32_0 : i32, i32
  }
  func.func @transform_2(%arg0: i32) -> (i32, i32) {
    %c0_i32 = arith.constant 0 : i32
    %c0_i32_0 = arith.constant 0 : i32
    %c0_i32_1 = arith.constant 0 : i32
    return %c0_i32, %c0_i32_0 : i32, i32
  }
  func.func @transform_3(%arg0: i32) -> (i32, i32) {
    %c0_i32 = arith.constant 0 : i32
    %c0_i32_0 = arith.constant 0 : i32
    %c0_i32_1 = arith.constant 0 : i32
    return %c0_i32, %c0_i32_0 : i32, i32
  }
  func.func @transform_4(%arg0: i32) -> (i32, i32) {
    %c0_i32 = arith.constant 0 : i32
    %c0_i32_0 = arith.constant 0 : i32
    %c0_i32_1 = arith.constant 0 : i32
    return %c0_i32, %c0_i32_0 : i32, i32
  }
  func.func @transform_5(%arg0: i32) -> (i32, i32) {
    %c0_i32 = arith.constant 0 : i32
    %c0_i32_0 = arith.constant 0 : i32
    %c0_i32_1 = arith.constant 0 : i32
    return %c0_i32, %c0_i32_0 : i32, i32
  }
  func.func @transform_6(%arg0: i32) -> (i32, i32) {
    %c0_i32 = arith.constant 0 : i32
    %c0_i32_0 = arith.constant 0 : i32
    %c0_i32_1 = arith.constant 0 : i32
    return %c0_i32, %c0_i32_0 : i32, i32
  }
  func.func @transform_7(%arg0: i32) -> (i32, i32) {
    %c0_i32 = arith.constant 0 : i32
    %c0_i32_0 = arith.constant 0 : i32
    %c0_i32_1 = arith.constant 0 : i32
    return %c0_i32, %c0_i32_0 : i32, i32
  }
  func.func @transform_8(%arg0: i32) -> (i32, i32) {
    %c0_i32 = arith.constant 0 : i32
    %c0_i32_0 = arith.constant 0 : i32
    %c0_i32_1 = arith.constant 0 : i32
    return %c0_i32, %c0_i32_0 : i32, i32
  }
  func.func @transform_9(%arg0: i32) -> (i32, i32) {
    %c0_i32 = arith.constant 0 : i32
    %c0_i32_0 = arith.constant 0 : i32
    return %c0_i32, %arg0 : i32, i32
  }
}

</mosaic_0001>

<llo_original>
// kernel: simple_nn_forward.1
$region0: #{simple_nn_forward.1}
  #allocation0 [shape = 'u32[]', space=smem, size = 0x4, offset = 0x4, fixed_abs, tag = 'smem constant byte address 0x4 - core index']
  #allocation1 [shape = 'u32[144,128]{1,0:T(1,128)}', space=vmem, size = 0x12000, scoped, tag = 'internal scratch']
  %s0 = inlined_call_operand.vmem [shape: f32[8,256], index: 0, kind: input, shape index: {}]
  %s1 = inlined_call_operand.hbm [shape: bf16[256,256], index: 1, kind: input, shape index: {}]
  %s2 = inlined_call_operand.vmem [shape: f32[1,256], index: 2, kind: input, shape index: {}]
  %s3 = inlined_call_operand.hbm [shape: bf16[256,256], index: 3, kind: input, shape index: {}]
  %s4 = inlined_call_operand.vmem [shape: f32[1,256], index: 4, kind: input, shape index: {}]
  %s5 = inlined_call_operand.hbm [shape: bf16[256,128], index: 5, kind: input, shape index: {}]
  %s6 = inlined_call_operand.vmem [shape: f32[1,128], index: 6, kind: input, shape index: {}]
  %s7 = inlined_call_operand.vmem [shape: bf16[16,128], index: 7, kind: input, shape index: {}]
  %s8 = inlined_call_operand.vmem [shape: f32[16,1], index: 8, kind: input, shape index: {}]
  %s9 = inlined_call_operand.vmem [shape: f32[16,8], index: 9, kind: output, shape index: {}]
  %s10 = sld [smem:[#allocation0]]
  $region58: #{simple_nn_forward.1} parent=0
    _
  %s12 = ssub.s32 1, %s10
  %s13 = scalar_select 0, %s12, %s10
  $region1: #{simple_nn_forward.1} parent=0
    #allocation2 [shape = 'u8[131072]{0}', space=vmem, size = 0x20000, scoped, tag = 'input window, operand 1, single buffered']
    #allocation3 [shape = 's32[1]{0}', space=sflag, size = 0x4, scoped, tag = 'scoped memory for simple_nn_forward.1']
    #allocation4 [shape = 'u8[131072]{0}', space=vmem, size = 0x20000, scoped, tag = 'input window, operand 3, single buffered']
    #allocation5 [shape = 's32[1]{0}', space=sflag, size = 0x4, scoped, tag = 'scoped memory for simple_nn_forward.1']
    #allocation6 [shape = 'u8[65536]{0}', space=vmem, size = 0x10000, scoped, tag = 'input window, operand 5, single buffered']
    %14 = vsyncpa [#allocation3], 0
    %15 = vsyncpa [#allocation5], 0
    // Predicated region
    $region2: #{simple_nn_forward.1} parent=1 // pred_check
      _
    $region3: #{simple_nn_forward.1} parent=1 // pred_check_branch
      %17 = sbr.rel (0) target = $region5
    $region4: #{simple_nn_forward.1} parent=1 // pred_region
      _
    $region5: #{simple_nn_forward.1} parent=1 // pred_fallthru
      _
    // Predicated region
    $region6: #{simple_nn_forward.1} parent=1 // pred_check
      _
    $region7: #{simple_nn_forward.1} parent=1 // pred_check_branch
      %19 = sbr.rel (0) target = $region9
    $region8: #{simple_nn_forward.1} parent=1 // pred_region
      %s21 = ssub.s32 4096, 4096
      %22 = vsyncadd [#allocation3], %s21
      %s23 = sshll.u32 [#allocation2], 4
      %s24 = int_to_ptr.vmem [resolvable:$true] %s23
      %29 = dma.hbm_to_vmem [thread:$0]  %s1, 4096, %s24, [#allocation3], 128, 128, 8
    $region9: #{simple_nn_forward.1} parent=1 // pred_fallthru
      _
    // Predicated region
    $region10: #{simple_nn_forward.1} parent=1 // pred_check
      _
    $region11: #{simple_nn_forward.1} parent=1 // pred_check_branch
      %31 = sbr.rel (0) target = $region13
    $region12: #{simple_nn_forward.1} parent=1 // pred_region
      _
    $region13: #{simple_nn_forward.1} parent=1 // pred_fallthru
      _
    // Predicated region
    $region14: #{simple_nn_forward.1} parent=1 // pred_check
      _
    $region15: #{simple_nn_forward.1} parent=1 // pred_check_branch
      %33 = sbr.rel (0) target = $region17
    $region16: #{simple_nn_forward.1} parent=1 // pred_region
      %s35 = ssub.s32 4096, 4096
      %36 = vsyncadd [#allocation5], %s35
      %s37 = sshll.u32 [#allocation4], 4
      %s38 = int_to_ptr.vmem [resolvable:$true] %s37
      %43 = dma.hbm_to_vmem [thread:$0]  %s3, 4096, %s38, [#allocation5], 128, 128, 8
    $region17: #{simple_nn_forward.1} parent=1 // pred_fallthru
      _
    // Predicated region
    $region18: #{simple_nn_forward.1} parent=1 // pred_check
      _
    $region19: #{simple_nn_forward.1} parent=1 // pred_check_branch
      %45 = sbr.rel (0) target = $region21
    $region20: #{simple_nn_forward.1} parent=1 // pred_region
      _
    $region21: #{simple_nn_forward.1} parent=1 // pred_fallthru
      _
    // Predicated region
    $region22: #{simple_nn_forward.1} parent=1 // pred_check
      _
    $region23: #{simple_nn_forward.1} parent=1 // pred_check_branch
      %47 = sbr.rel (0) target = $region25
    $region24: #{simple_nn_forward.1} parent=1 // pred_region
      %s49 = ssub.s32 2048, 2048
      %50 = vsyncadd [#allocation5], %s49
      %s51 = sshll.u32 [#allocation6], 4
      %s52 = int_to_ptr.vmem [resolvable:$true] %s51
      %57 = dma.hbm_to_vmem [thread:$0]  %s5, 2048, %s52, [#allocation5], 64, 64, 4
    $region25: #{simple_nn_forward.1} parent=1 // pred_fallthru
      _
    // Predicated region
    $region26: #{simple_nn_forward.1} parent=1 // pred_check
      _
    $region27: #{simple_nn_forward.1} parent=1 // pred_check_branch
      %59 = sbr.rel (0) target = $region29
    $region28: #{simple_nn_forward.1} parent=1 // pred_region
      _
    $region29: #{simple_nn_forward.1} parent=1 // pred_fallthru
      _
    // Predicated region
    $region30: #{simple_nn_forward.1} parent=1 // pred_check
      _
    $region31: #{simple_nn_forward.1} parent=1 // pred_check_branch
      %61 = sbr.rel (0) target = $region33
    $region32: #{simple_nn_forward.1} parent=1 // pred_region
      _
    $region33: #{simple_nn_forward.1} parent=1 // pred_fallthru
      _
    // Predicated region
    $region34: #{simple_nn_forward.1} parent=1 // pred_check
      _
    $region35: #{simple_nn_forward.1} parent=1 // pred_check_branch
      %63 = sbr.rel (0) target = $region37
    $region36: #{simple_nn_forward.1} parent=1 // pred_region
      _
    $region37: #{simple_nn_forward.1} parent=1 // pred_fallthru
      _
    // Predicated region
    $region38: #{simple_nn_forward.1} parent=1 // pred_check
      _
    $region39: #{simple_nn_forward.1} parent=1 // pred_check_branch
      %65 = sbr.rel (0) target = $region41
    $region40: #{simple_nn_forward.1} parent=1 // pred_region
      %66 = dma.done [#allocation3], 4096
    $region41: #{simple_nn_forward.1} parent=1 // pred_fallthru
      _
    // Predicated region
    $region42: #{simple_nn_forward.1} parent=1 // pred_check
      _
    $region43: #{simple_nn_forward.1} parent=1 // pred_check_branch
      %68 = sbr.rel (0) target = $region45
    $region44: #{simple_nn_forward.1} parent=1 // pred_region
      %69 = dma.done [#allocation5], 4096
    $region45: #{simple_nn_forward.1} parent=1 // pred_fallthru
      _
    // Predicated region
    $region46: #{simple_nn_forward.1} parent=1 // pred_check
      _
    $region47: #{simple_nn_forward.1} parent=1 // pred_check_branch
      %71 = sbr.rel (0) target = $region49
    $region48: #{simple_nn_forward.1} parent=1 // pred_region
      %72 = dma.done [#allocation5], 2048
    $region49: #{simple_nn_forward.1} parent=1 // pred_fallthru
      _
    %v74 = vld [vmem:[%s0] sm:$0xff]
    %v75 = vld [vmem:[%s0 + $0x8] sm:$0xff]
    %v76 = vpack.c.bf16 %v74, %v74
    %v77 = vpack.c.bf16 %v75, %v75
    %v78 = vld [vmem:[#allocation2] sm:$0xff]
    %v79 = vld [vmem:[#allocation2 + $0x8] sm:$0xff]
    %v80 = vld [vmem:[#allocation2 + $0x10] sm:$0xff]
    %v81 = vld [vmem:[#allocation2 + $0x18] sm:$0xff]
    %v82 = vld [vmem:[#allocation2 + $0x20] sm:$0xff]
    %v83 = vld [vmem:[#allocation2 + $0x28] sm:$0xff]
    %v84 = vld [vmem:[#allocation2 + $0x30] sm:$0xff]
    %v85 = vld [vmem:[#allocation2 + $0x38] sm:$0xff]
    %v86 = vld [vmem:[#allocation2 + $0x40] sm:$0xff]
    %v87 = vld [vmem:[#allocation2 + $0x48] sm:$0xff]
    %v88 = vld [vmem:[#allocation2 + $0x50] sm:$0xff]
    %v89 = vld [vmem:[#allocation2 + $0x58] sm:$0xff]
    %v90 = vld [vmem:[#allocation2 + $0x60] sm:$0xff]
    %v91 = vld [vmem:[#allocation2 + $0x68] sm:$0xff]
    %v92 = vld [vmem:[#allocation2 + $0x70] sm:$0xff]
    %v93 = vld [vmem:[#allocation2 + $0x78] sm:$0xff]
    %v94 = vld [vmem:[#allocation2 + $0x80] sm:$0xff]
    %v95 = vld [vmem:[#allocation2 + $0x88] sm:$0xff]
    %v96 = vld [vmem:[#allocation2 + $0x90] sm:$0xff]
    %v97 = vld [vmem:[#allocation2 + $0x98] sm:$0xff]
    %v98 = vld [vmem:[#allocation2 + $0xa0] sm:$0xff]
    %v99 = vld [vmem:[#allocation2 + $0xa8] sm:$0xff]
    %v100 = vld [vmem:[#allocation2 + $0xb0] sm:$0xff]
    %v101 = vld [vmem:[#allocation2 + $0xb8] sm:$0xff]
    %v102 = vld [vmem:[#allocation2 + $0xc0] sm:$0xff]
    %v103 = vld [vmem:[#allocation2 + $0xc8] sm:$0xff]
    %v104 = vld [vmem:[#allocation2 + $0xd0] sm:$0xff]
    %v105 = vld [vmem:[#allocation2 + $0xd8] sm:$0xff]
    %v106 = vld [vmem:[#allocation2 + $0xe0] sm:$0xff]
    %v107 = vld [vmem:[#allocation2 + $0xe8] sm:$0xff]
    %v108 = vld [vmem:[#allocation2 + $0xf0] sm:$0xff]
    %v109 = vld [vmem:[#allocation2 + $0xf8] sm:$0xff]
    %v110 = vld [vmem:[%s2] sm:$0x3]
    %v112 = vlaneseq
    %v113 = vshrl.u32 %v112, 7
    %v114 = vsub.s32 0, %v113
    %v115 = vrot.slane %v110, %v114
    %v116 = vlaneseq
    %v117 = vshrl.u32 %v116, 7
    %v118 = vsub.s32 1, %v117
    %v119 = vrot.slane %v110, %v118
    %v154 = vunpack.c.l.b16 %v78
    %v155 = vunpack.c.h.b16 %v78
    %v156 = vunpack.c.l.b16 %v79
    %v157 = vunpack.c.h.b16 %v79
    %v158 = vunpack.c.l.b16 %v80
    %v159 = vunpack.c.h.b16 %v80
    %v160 = vunpack.c.l.b16 %v81
    %v161 = vunpack.c.h.b16 %v81
    %v162 = vunpack.c.l.b16 %v82
    %v163 = vunpack.c.h.b16 %v82
    %v164 = vunpack.c.l.b16 %v83
    %v165 = vunpack.c.h.b16 %v83
    %v166 = vunpack.c.l.b16 %v84
    %v167 = vunpack.c.h.b16 %v84
    %v168 = vunpack.c.l.b16 %v85
    %v169 = vunpack.c.h.b16 %v85
    %v170 = vunpack.c.l.b16 %v86
    %v171 = vunpack.c.h.b16 %v86
    %v172 = vunpack.c.l.b16 %v87
    %v173 = vunpack.c.h.b16 %v87
    %v174 = vunpack.c.l.b16 %v88
    %v175 = vunpack.c.h.b16 %v88
    %v176 = vunpack.c.l.b16 %v89
    %v177 = vunpack.c.h.b16 %v89
    %v178 = vunpack.c.l.b16 %v90
    %v179 = vunpack.c.h.b16 %v90
    %v180 = vunpack.c.l.b16 %v91
    %v181 = vunpack.c.h.b16 %v91
    %v182 = vunpack.c.l.b16 %v92
    %v183 = vunpack.c.h.b16 %v92
    %v184 = vunpack.c.l.b16 %v93
    %v185 = vunpack.c.h.b16 %v93
    %v186 = vunpack.c.l.b16 %v94
    %v187 = vunpack.c.h.b16 %v94
    %v188 = vunpack.c.l.b16 %v95
    %v189 = vunpack.c.h.b16 %v95
    %v190 = vunpack.c.l.b16 %v96
    %v191 = vunpack.c.h.b16 %v96
    %v192 = vunpack.c.l.b16 %v97
    %v193 = vunpack.c.h.b16 %v97
    %v194 = vunpack.c.l.b16 %v98
    %v195 = vunpack.c.h.b16 %v98
    %v196 = vunpack.c.l.b16 %v99
    %v197 = vunpack.c.h.b16 %v99
    %v198 = vunpack.c.l.b16 %v100
    %v199 = vunpack.c.h.b16 %v100
    %v200 = vunpack.c.l.b16 %v101
    %v201 = vunpack.c.h.b16 %v101
    %v202 = vunpack.c.l.b16 %v102
    %v203 = vunpack.c.h.b16 %v102
    %v204 = vunpack.c.l.b16 %v103
    %v205 = vunpack.c.h.b16 %v103
    %v206 = vunpack.c.l.b16 %v104
    %v207 = vunpack.c.h.b16 %v104
    %v208 = vunpack.c.l.b16 %v105
    %v209 = vunpack.c.h.b16 %v105
    %v210 = vunpack.c.l.b16 %v106
    %v211 = vunpack.c.h.b16 %v106
    %v212 = vunpack.c.l.b16 %v107
    %v213 = vunpack.c.h.b16 %v107
    %v214 = vunpack.c.l.b16 %v108
    %v215 = vunpack.c.h.b16 %v108
    %v216 = vunpack.c.l.b16 %v109
    %v217 = vunpack.c.h.b16 %v109
    %v218 = vpack.c.b16 %v156, %v154
    %v219 = vpack.c.b16 %v157, %v155
    %v220 = vpack.c.b16 %v160, %v158
    %v221 = vpack.c.b16 %v161, %v159
    %v222 = vpack.c.b16 %v164, %v162
    %v223 = vpack.c.b16 %v165, %v163
    %v224 = vpack.c.b16 %v168, %v166
    %v225 = vpack.c.b16 %v169, %v167
    %v226 = vpack.c.b16 %v172, %v170
    %v227 = vpack.c.b16 %v173, %v171
    %v228 = vpack.c.b16 %v176, %v174
    %v229 = vpack.c.b16 %v177, %v175
    %v230 = vpack.c.b16 %v180, %v178
    %v231 = vpack.c.b16 %v181, %v179
    %v232 = vpack.c.b16 %v184, %v182
    %v233 = vpack.c.b16 %v185, %v183
    %v234 = vpack.c.b16 %v188, %v186
    %v235 = vpack.c.b16 %v189, %v187
    %v236 = vpack.c.b16 %v192, %v190
    %v237 = vpack.c.b16 %v193, %v191
    %v238 = vpack.c.b16 %v196, %v194
    %v239 = vpack.c.b16 %v197, %v195
    %v240 = vpack.c.b16 %v200, %v198
    %v241 = vpack.c.b16 %v201, %v199
    %v242 = vpack.c.b16 %v204, %v202
    %v243 = vpack.c.b16 %v205, %v203
    %v244 = vpack.c.b16 %v208, %v206
    %v245 = vpack.c.b16 %v209, %v207
    %v246 = vpack.c.b16 %v212, %v210
    %v247 = vpack.c.b16 %v213, %v211
    %v248 = vpack.c.b16 %v216, %v214
    %v249 = vpack.c.b16 %v217, %v215
    %282 = vmatprep.subr.bf16.mxu0 %v219
    %283 = vmatpush1.bf16.msra.mxu0 %v218
    %284 = vmatprep.subr.bf16.mxu0 %v221
    %285 = vmatpush1.bf16.msra.mxu0 %v220
    %286 = vmatprep.subr.bf16.mxu0 %v223
    %287 = vmatpush1.bf16.msra.mxu0 %v222
    %288 = vmatprep.subr.bf16.mxu0 %v225
    %289 = vmatpush1.bf16.msra.mxu0 %v224
    %290 = vmatprep.subr.bf16.mxu0 %v227
    %291 = vmatpush1.bf16.msra.mxu0 %v226
    %292 = vmatprep.subr.bf16.mxu0 %v229
    %293 = vmatpush1.bf16.msra.mxu0 %v228
    %294 = vmatprep.subr.bf16.mxu0 %v231
    %295 = vmatpush1.bf16.msra.mxu0 %v230
    %296 = vmatprep.subr.bf16.mxu0 %v233
    %297 = vmatpush1.bf16.msra.mxu0 %v232
    %298 = vmatprep.subr.bf16.mxu0 %v235
    %299 = vmatpush1.bf16.msra.mxu0 %v234
    %300 = vmatprep.subr.bf16.mxu0 %v237
    %301 = vmatpush1.bf16.msra.mxu0 %v236
    %302 = vmatprep.subr.bf16.mxu0 %v239
    %303 = vmatpush1.bf16.msra.mxu0 %v238
    %304 = vmatprep.subr.bf16.mxu0 %v241
    %305 = vmatpush1.bf16.msra.mxu0 %v240
    %306 = vmatprep.subr.bf16.mxu0 %v243
    %307 = vmatpush1.bf16.msra.mxu0 %v242
    %308 = vmatprep.subr.bf16.mxu0 %v245
    %309 = vmatpush1.bf16.msra.mxu0 %v244
    %310 = vmatprep.subr.bf16.mxu0 %v247
    %311 = vmatpush1.bf16.msra.mxu0 %v246
    %312 = vmatprep.subr.bf16.mxu0 %v249
    %313 = vmatpush1.bf16.msra.mxu0 %v248
    %314 = vmatprep.mubr.bf16.mxu0 %v77
    %315 = vmatmul.mubr.bf16.gmra.mrb[0].mxu0 %v76
    %v316 = vpop.f32.mrb[0].mxu0
    %v317 = vadd.f32 %v115, %v316
    %v318 = vpop.f32.mrb[0].mxu0
    %v319 = vadd.f32 %v119, %v318
    %v320 = vpop.f32.mrb[0].mxu0
    %v321 = vpop.f32.mrb[0].mxu0
    %322 = vdwg.mxu0
    %v323 = vmax.f32 %v317, 0.0
    %v324 = vmax.f32 %v319, 0.0
    %v325 = vpack.c.bf16 %v323, %v323
    %v326 = vpack.c.bf16 %v324, %v324
    %v327 = vld [vmem:[#allocation4] sm:$0xff]
    %v328 = vld [vmem:[#allocation4 + $0x8] sm:$0xff]
    %v329 = vld [vmem:[#allocation4 + $0x10] sm:$0xff]
    %v330 = vld [vmem:[#allocation4 + $0x18] sm:$0xff]
    %v331 = vld [vmem:[#allocation4 + $0x20] sm:$0xff]
    %v332 = vld [vmem:[#allocation4 + $0x28] sm:$0xff]
    %v333 = vld [vmem:[#allocation4 + $0x30] sm:$0xff]
    %v334 = vld [vmem:[#allocation4 + $0x38] sm:$0xff]
    %v335 = vld [vmem:[#allocation4 + $0x40] sm:$0xff]
    %v336 = vld [vmem:[#allocation4 + $0x48] sm:$0xff]
    %v337 = vld [vmem:[#allocation4 + $0x50] sm:$0xff]
    %v338 = vld [vmem:[#allocation4 + $0x58] sm:$0xff]
    %v339 = vld [vmem:[#allocation4 + $0x60] sm:$0xff]
    %v340 = vld [vmem:[#allocation4 + $0x68] sm:$0xff]
    %v341 = vld [vmem:[#allocation4 + $0x70] sm:$0xff]
    %v342 = vld [vmem:[#allocation4 + $0x78] sm:$0xff]
    %v343 = vld [vmem:[#allocation4 + $0x80] sm:$0xff]
    %v344 = vld [vmem:[#allocation4 + $0x88] sm:$0xff]
    %v345 = vld [vmem:[#allocation4 + $0x90] sm:$0xff]
    %v346 = vld [vmem:[#allocation4 + $0x98] sm:$0xff]
    %v347 = vld [vmem:[#allocation4 + $0xa0] sm:$0xff]
    %v348 = vld [vmem:[#allocation4 + $0xa8] sm:$0xff]
    %v349 = vld [vmem:[#allocation4 + $0xb0] sm:$0xff]
    %v350 = vld [vmem:[#allocation4 + $0xb8] sm:$0xff]
    %v351 = vld [vmem:[#allocation4 + $0xc0] sm:$0xff]
    %v352 = vld [vmem:[#allocation4 + $0xc8] sm:$0xff]
    %v353 = vld [vmem:[#allocation4 + $0xd0] sm:$0xff]
    %v354 = vld [vmem:[#allocation4 + $0xd8] sm:$0xff]
    %v355 = vld [vmem:[#allocation4 + $0xe0] sm:$0xff]
    %v356 = vld [vmem:[#allocation4 + $0xe8] sm:$0xff]
    %v357 = vld [vmem:[#allocation4 + $0xf0] sm:$0xff]
    %v358 = vld [vmem:[#allocation4 + $0xf8] sm:$0xff]
    %v359 = vld [vmem:[%s4] sm:$0x3]
    %v361 = vlaneseq
    %v362 = vshrl.u32 %v361, 7
    %v363 = vsub.s32 0, %v362
    %v364 = vrot.slane %v359, %v363
    %v365 = vlaneseq
    %v366 = vshrl.u32 %v365, 7
    %v367 = vsub.s32 1, %v366
    %v368 = vrot.slane %v359, %v367
    %v403 = vunpack.c.l.b16 %v327
    %v404 = vunpack.c.h.b16 %v327
    %v405 = vunpack.c.l.b16 %v328
    %v406 = vunpack.c.h.b16 %v328
    %v407 = vunpack.c.l.b16 %v329
    %v408 = vunpack.c.h.b16 %v329
    %v409 = vunpack.c.l.b16 %v330
    %v410 = vunpack.c.h.b16 %v330
    %v411 = vunpack.c.l.b16 %v331
    %v412 = vunpack.c.h.b16 %v331
    %v413 = vunpack.c.l.b16 %v332
    %v414 = vunpack.c.h.b16 %v332
    %v415 = vunpack.c.l.b16 %v333
    %v416 = vunpack.c.h.b16 %v333
    %v417 = vunpack.c.l.b16 %v334
    %v418 = vunpack.c.h.b16 %v334
    %v419 = vunpack.c.l.b16 %v335
    %v420 = vunpack.c.h.b16 %v335
    %v421 = vunpack.c.l.b16 %v336
    %v422 = vunpack.c.h.b16 %v336
    %v423 = vunpack.c.l.b16 %v337
    %v424 = vunpack.c.h.b16 %v337
    %v425 = vunpack.c.l.b16 %v338
    %v426 = vunpack.c.h.b16 %v338
    %v427 = vunpack.c.l.b16 %v339
    %v428 = vunpack.c.h.b16 %v339
    %v429 = vunpack.c.l.b16 %v340
    %v430 = vunpack.c.h.b16 %v340
    %v431 = vunpack.c.l.b16 %v341
    %v432 = vunpack.c.h.b16 %v341
    %v433 = vunpack.c.l.b16 %v342
    %v434 = vunpack.c.h.b16 %v342
    %v435 = vunpack.c.l.b16 %v343
    %v436 = vunpack.c.h.b16 %v343
    %v437 = vunpack.c.l.b16 %v344
    %v438 = vunpack.c.h.b16 %v344
    %v439 = vunpack.c.l.b16 %v345
    %v440 = vunpack.c.h.b16 %v345
    %v441 = vunpack.c.l.b16 %v346
    %v442 = vunpack.c.h.b16 %v346
    %v443 = vunpack.c.l.b16 %v347
    %v444 = vunpack.c.h.b16 %v347
    %v445 = vunpack.c.l.b16 %v348
    %v446 = vunpack.c.h.b16 %v348
    %v447 = vunpack.c.l.b16 %v349
    %v448 = vunpack.c.h.b16 %v349
    %v449 = vunpack.c.l.b16 %v350
    %v450 = vunpack.c.h.b16 %v350
    %v451 = vunpack.c.l.b16 %v351
    %v452 = vunpack.c.h.b16 %v351
    %v453 = vunpack.c.l.b16 %v352
    %v454 = vunpack.c.h.b16 %v352
    %v455 = vunpack.c.l.b16 %v353
    %v456 = vunpack.c.h.b16 %v353
    %v457 = vunpack.c.l.b16 %v354
    %v458 = vunpack.c.h.b16 %v354
    %v459 = vunpack.c.l.b16 %v355
    %v460 = vunpack.c.h.b16 %v355
    %v461 = vunpack.c.l.b16 %v356
    %v462 = vunpack.c.h.b16 %v356
    %v463 = vunpack.c.l.b16 %v357
    %v464 = vunpack.c.h.b16 %v357
    %v465 = vunpack.c.l.b16 %v358
    %v466 = vunpack.c.h.b16 %v358
    %v467 = vpack.c.b16 %v405, %v403
    %v468 = vpack.c.b16 %v406, %v404
    %v469 = vpack.c.b16 %v409, %v407
    %v470 = vpack.c.b16 %v410, %v408
    %v471 = vpack.c.b16 %v413, %v411
    %v472 = vpack.c.b16 %v414, %v412
    %v473 = vpack.c.b16 %v417, %v415
    %v474 = vpack.c.b16 %v418, %v416
    %v475 = vpack.c.b16 %v421, %v419
    %v476 = vpack.c.b16 %v422, %v420
    %v477 = vpack.c.b16 %v425, %v423
    %v478 = vpack.c.b16 %v426, %v424
    %v479 = vpack.c.b16 %v429, %v427
    %v480 = vpack.c.b16 %v430, %v428
    %v481 = vpack.c.b16 %v433, %v431
    %v482 = vpack.c.b16 %v434, %v432
    %v483 = vpack.c.b16 %v437, %v435
    %v484 = vpack.c.b16 %v438, %v436
    %v485 = vpack.c.b16 %v441, %v439
    %v486 = vpack.c.b16 %v442, %v440
    %v487 = vpack.c.b16 %v445, %v443
    %v488 = vpack.c.b16 %v446, %v444
    %v489 = vpack.c.b16 %v449, %v447
    %v490 = vpack.c.b16 %v450, %v448
    %v491 = vpack.c.b16 %v453, %v451
    %v492 = vpack.c.b16 %v454, %v452
    %v493 = vpack.c.b16 %v457, %v455
    %v494 = vpack.c.b16 %v458, %v456
    %v495 = vpack.c.b16 %v461, %v459
    %v496 = vpack.c.b16 %v462, %v460
    %v497 = vpack.c.b16 %v465, %v463
    %v498 = vpack.c.b16 %v466, %v464
    %531 = vmatprep.subr.bf16.mxu0 %v468
    %532 = vmatpush1.bf16.msra.mxu0 %v467
    %533 = vmatprep.subr.bf16.mxu0 %v470
    %534 = vmatpush1.bf16.msra.mxu0 %v469
    %535 = vmatprep.subr.bf16.mxu0 %v472
    %536 = vmatpush1.bf16.msra.mxu0 %v471
    %537 = vmatprep.subr.bf16.mxu0 %v474
    %538 = vmatpush1.bf16.msra.mxu0 %v473
    %539 = vmatprep.subr.bf16.mxu0 %v476
    %540 = vmatpush1.bf16.msra.mxu0 %v475
    %541 = vmatprep.subr.bf16.mxu0 %v478
    %542 = vmatpush1.bf16.msra.mxu0 %v477
    %543 = vmatprep.subr.bf16.mxu0 %v480
    %544 = vmatpush1.bf16.msra.mxu0 %v479
    %545 = vmatprep.subr.bf16.mxu0 %v482
    %546 = vmatpush1.bf16.msra.mxu0 %v481
    %547 = vmatprep.subr.bf16.mxu0 %v484
    %548 = vmatpush1.bf16.msra.mxu0 %v483
    %549 = vmatprep.subr.bf16.mxu0 %v486
    %550 = vmatpush1.bf16.msra.mxu0 %v485
    %551 = vmatprep.subr.bf16.mxu0 %v488
    %552 = vmatpush1.bf16.msra.mxu0 %v487
    %553 = vmatprep.subr.bf16.mxu0 %v490
    %554 = vmatpush1.bf16.msra.mxu0 %v489
    %555 = vmatprep.subr.bf16.mxu0 %v492
    %556 = vmatpush1.bf16.msra.mxu0 %v491
    %557 = vmatprep.subr.bf16.mxu0 %v494
    %558 = vmatpush1.bf16.msra.mxu0 %v493
    %559 = vmatprep.subr.bf16.mxu0 %v496
    %560 = vmatpush1.bf16.msra.mxu0 %v495
    %561 = vmatprep.subr.bf16.mxu0 %v498
    %562 = vmatpush1.bf16.msra.mxu0 %v497
    %563 = vmatprep.mubr.bf16.mxu0 %v326
    %564 = vmatmul.mubr.bf16.gmra.mrb[0].mxu0 %v325
    %v565 = vpop.f32.mrb[0].mxu0
    %v566 = vadd.f32 %v364, %v565
    %v567 = vpop.f32.mrb[0].mxu0
    %v568 = vadd.f32 %v368, %v567
    %v569 = vpop.f32.mrb[0].mxu0
    %v570 = vpop.f32.mrb[0].mxu0
    %571 = vdwg.mxu0
    %v572 = vmax.f32 %v566, 0.0
    %v573 = vmax.f32 %v568, 0.0
    %v574 = vpack.c.bf16 %v572, %v572
    %v575 = vpack.c.bf16 %v573, %v573
    %v576 = vld [vmem:[#allocation6] sm:$0xf]
    %v577 = vld [vmem:[#allocation6 + $0x4] sm:$0xf]
    %v578 = vld [vmem:[#allocation6 + $0x8] sm:$0xf]
    %v579 = vld [vmem:[#allocation6 + $0xc] sm:$0xf]
    %v580 = vld [vmem:[#allocation6 + $0x10] sm:$0xf]
    %v581 = vld [vmem:[#allocation6 + $0x14] sm:$0xf]
    %v582 = vld [vmem:[#allocation6 + $0x18] sm:$0xf]
    %v583 = vld [vmem:[#allocation6 + $0x1c] sm:$0xf]
    %v584 = vld [vmem:[#allocation6 + $0x20] sm:$0xf]
    %v585 = vld [vmem:[#allocation6 + $0x24] sm:$0xf]
    %v586 = vld [vmem:[#allocation6 + $0x28] sm:$0xf]
    %v587 = vld [vmem:[#allocation6 + $0x2c] sm:$0xf]
    %v588 = vld [vmem:[#allocation6 + $0x30] sm:$0xf]
    %v589 = vld [vmem:[#allocation6 + $0x34] sm:$0xf]
    %v590 = vld [vmem:[#allocation6 + $0x38] sm:$0xf]
    %v591 = vld [vmem:[#allocation6 + $0x3c] sm:$0xf]
    %v592 = vld [vmem:[#allocation6 + $0x40] sm:$0xf]
    %v593 = vld [vmem:[#allocation6 + $0x44] sm:$0xf]
    %v594 = vld [vmem:[#allocation6 + $0x48] sm:$0xf]
    %v595 = vld [vmem:[#allocation6 + $0x4c] sm:$0xf]
    %v596 = vld [vmem:[#allocation6 + $0x50] sm:$0xf]
    %v597 = vld [vmem:[#allocation6 + $0x54] sm:$0xf]
    %v598 = vld [vmem:[#allocation6 + $0x58] sm:$0xf]
    %v599 = vld [vmem:[#allocation6 + $0x5c] sm:$0xf]
    %v600 = vld [vmem:[#allocation6 + $0x60] sm:$0xf]
    %v601 = vld [vmem:[#allocation6 + $0x64] sm:$0xf]
    %v602 = vld [vmem:[#allocation6 + $0x68] sm:$0xf]
    %v603 = vld [vmem:[#allocation6 + $0x6c] sm:$0xf]
    %v604 = vld [vmem:[#allocation6 + $0x70] sm:$0xf]
    %v605 = vld [vmem:[#allocation6 + $0x74] sm:$0xf]
    %v606 = vld [vmem:[#allocation6 + $0x78] sm:$0xf]
    %v607 = vld [vmem:[#allocation6 + $0x7c] sm:$0xf]
    %v608 = vld [vmem:[%s6] sm:$0x1]
    %v610 = vlaneseq
    %v611 = vshrl.u32 %v610, 7
    %v612 = vsub.s32 0, %v611
    %v613 = vrot.slane %v608, %v612
    %v647 = vunpack.c.l.b16 %v576
    %v648 = vunpack.c.l.b16 %v577
    %v649 = vunpack.c.l.b16 %v578
    %v650 = vunpack.c.l.b16 %v579
    %v651 = vunpack.c.l.b16 %v580
    %v652 = vunpack.c.l.b16 %v581
    %v653 = vunpack.c.l.b16 %v582
    %v654 = vunpack.c.l.b16 %v583
    %v655 = vunpack.c.l.b16 %v584
    %v656 = vunpack.c.l.b16 %v585
    %v657 = vunpack.c.l.b16 %v586
    %v658 = vunpack.c.l.b16 %v587
    %v659 = vunpack.c.l.b16 %v588
    %v660 = vunpack.c.l.b16 %v589
    %v661 = vunpack.c.l.b16 %v590
    %v662 = vunpack.c.l.b16 %v591
    %v663 = vunpack.c.l.b16 %v592
    %v664 = vunpack.c.l.b16 %v593
    %v665 = vunpack.c.l.b16 %v594
    %v666 = vunpack.c.l.b16 %v595
    %v667 = vunpack.c.l.b16 %v596
    %v668 = vunpack.c.l.b16 %v597
    %v669 = vunpack.c.l.b16 %v598
    %v670 = vunpack.c.l.b16 %v599
    %v671 = vunpack.c.l.b16 %v600
    %v672 = vunpack.c.l.b16 %v601
    %v673 = vunpack.c.l.b16 %v602
    %v674 = vunpack.c.l.b16 %v603
    %v675 = vunpack.c.l.b16 %v604
    %v676 = vunpack.c.l.b16 %v605
    %v677 = vunpack.c.l.b16 %v606
    %v678 = vunpack.c.l.b16 %v607
    %v679 = vpack.c.b16 %v648, %v647
    %v680 = vpack.c.b16 %v650, %v649
    %v681 = vpack.c.b16 %v652, %v651
    %v682 = vpack.c.b16 %v654, %v653
    %v683 = vpack.c.b16 %v656, %v655
    %v684 = vpack.c.b16 %v658, %v657
    %v685 = vpack.c.b16 %v660, %v659
    %v686 = vpack.c.b16 %v662, %v661
    %v687 = vpack.c.b16 %v664, %v663
    %v688 = vpack.c.b16 %v666, %v665
    %v689 = vpack.c.b16 %v668, %v667
    %v690 = vpack.c.b16 %v670, %v669
    %v691 = vpack.c.b16 %v672, %v671
    %v692 = vpack.c.b16 %v674, %v673
    %v693 = vpack.c.b16 %v676, %v675
    %v694 = vpack.c.b16 %v678, %v677
    %711 = vmatprep.subr.bf16.mxu0 0
    %712 = vmatpush1.bf16.msra.mxu0 %v679
    %713 = vmatprep.subr.bf16.mxu0 0
    %714 = vmatpush1.bf16.msra.mxu0 %v680
    %715 = vmatprep.subr.bf16.mxu0 0
    %716 = vmatpush1.bf16.msra.mxu0 %v681
    %717 = vmatprep.subr.bf16.mxu0 0
    %718 = vmatpush1.bf16.msra.mxu0 %v682
    %719 = vmatprep.subr.bf16.mxu0 0
    %720 = vmatpush1.bf16.msra.mxu0 %v683
    %721 = vmatprep.subr.bf16.mxu0 0
    %722 = vmatpush1.bf16.msra.mxu0 %v684
    %723 = vmatprep.subr.bf16.mxu0 0
    %724 = vmatpush1.bf16.msra.mxu0 %v685
    %725 = vmatprep.subr.bf16.mxu0 0
    %726 = vmatpush1.bf16.msra.mxu0 %v686
    %727 = vmatprep.subr.bf16.mxu0 0
    %728 = vmatpush1.bf16.msra.mxu0 %v687
    %729 = vmatprep.subr.bf16.mxu0 0
    %730 = vmatpush1.bf16.msra.mxu0 %v688
    %731 = vmatprep.subr.bf16.mxu0 0
    %732 = vmatpush1.bf16.msra.mxu0 %v689
    %733 = vmatprep.subr.bf16.mxu0 0
    %734 = vmatpush1.bf16.msra.mxu0 %v690
    %735 = vmatprep.subr.bf16.mxu0 0
    %736 = vmatpush1.bf16.msra.mxu0 %v691
    %737 = vmatprep.subr.bf16.mxu0 0
    %738 = vmatpush1.bf16.msra.mxu0 %v692
    %739 = vmatprep.subr.bf16.mxu0 0
    %740 = vmatpush1.bf16.msra.mxu0 %v693
    %741 = vmatprep.subr.bf16.mxu0 0
    %742 = vmatpush1.bf16.msra.mxu0 %v694
    %743 = vmatprep.mubr.bf16.mxu0 %v575
    %744 = vmatmul.mubr.bf16.gmra.mrb[0].mxu0 %v574
    %v745 = vpop.f32.mrb[0].mxu0
    %v746 = vadd.f32 %v613, %v745
    %v747 = vpop.f32.mrb[0].mxu0
    %v748 = vpop.f32.mrb[0].mxu0
    %v749 = vpop.f32.mrb[0].mxu0
    %750 = vdwg.mxu0
    %v751 = vmax.f32 %v746, 0.0
    %v752 = vld [vmem:[%s7] sm:$0xf]
    %v753 = vld [vmem:[%s7 + $0x4] sm:$0xf]
    %v754 = vpack.c.bf16 %v751, %v751
    %v755 = vld [vmem:[%s8] sm:$0xff]
    %v756 = vld [vmem:[%s8 + $0x8] sm:$0xff]
    %758 = vset.pattern.permute.xlu0 0
    %759 = vperm.xlu0 %758, %v755
    %v760 = vpop.permute.xlu0 %759
    %763 = vset.pattern.permute.xlu0 0
    %764 = vperm.xlu0 %763, %v756
    %v765 = vpop.permute.xlu0 %764
    %v769 = vunpack.c.l.b16 %v752
    %v770 = vunpack.c.l.b16 %v753
    %v771 = vpack.c.b16 %v770, %v769
    %773 = vmatprep.subr.bf16.mxu0 0
    %774 = vmatpush1.bf16.xpose.msra.mxu0 %v754
    %775 = vmatprep.subr.bf16.mxu0 0
    %776 = vmatpush1.bf16.xpose.msra.mxu0 0
    %777 = vmatprep.subr.bf16.mxu0 0
    %778 = vmatpush1.bf16.xpose.msra.mxu0 0
    %779 = vmatprep.subr.bf16.mxu0 0
    %780 = vmatpush1.bf16.xpose.msra.mxu0 0
    %781 = vmatprep.subr.bf16.mxu0 0
    %782 = vmatpush1.bf16.xpose.msra.mxu0 0
    %783 = vmatprep.subr.bf16.mxu0 0
    %784 = vmatpush1.bf16.xpose.msra.mxu0 0
    %785 = vmatprep.subr.bf16.mxu0 0
    %786 = vmatpush1.bf16.xpose.msra.mxu0 0
    %787 = vmatprep.subr.bf16.mxu0 0
    %788 = vmatpush1.bf16.xpose.msra.mxu0 0
    %789 = vmatprep.subr.bf16.mxu0 0
    %790 = vmatpush1.bf16.xpose.msra.mxu0 0
    %791 = vmatprep.subr.bf16.mxu0 0
    %792 = vmatpush1.bf16.xpose.msra.mxu0 0
    %793 = vmatprep.subr.bf16.mxu0 0
    %794 = vmatpush1.bf16.xpose.msra.mxu0 0
    %795 = vmatprep.subr.bf16.mxu0 0
    %796 = vmatpush1.bf16.xpose.msra.mxu0 0
    %797 = vmatprep.subr.bf16.mxu0 0
    %798 = vmatpush1.bf16.xpose.msra.mxu0 0
    %799 = vmatprep.subr.bf16.mxu0 0
    %800 = vmatpush1.bf16.xpose.msra.mxu0 0
    %801 = vmatprep.subr.bf16.mxu0 0
    %802 = vmatpush1.bf16.xpose.msra.mxu0 0
    %803 = vmatprep.subr.bf16.mxu0 0
    %804 = vmatpush1.bf16.xpose.msra.mxu0 0
    %805 = vmatprep.mubr.bf16.mxu0 0
    %806 = vmatmul.mubr.bf16.gmra.mrb[0].mxu0 %v771
    %v807 = vpop.f32.mrb[0].mxu0
    %v808 = vadd.f32 %v760, %v807
    %v809 = vpop.f32.mrb[0].mxu0
    %v810 = vpop.f32.mrb[0].mxu0
    %v811 = vadd.f32 %v765, %v810
    %v812 = vpop.f32.mrb[0].mxu0
    %813 = vdwg.mxu0
    %v814 = vmul.f32 %v808, 0.5
    %v815 = vmul.f32 %v811, 0.5
    %v816 = vtanh.pop %v814
    %v817 = vtanh.pop %v815
    %v818 = vmul.f32 %v816, 0.5
    %v819 = vmul.f32 %v817, 0.5
    %v820 = vadd.f32 %v818, 0.5
    %v821 = vadd.f32 %v819, 0.5
    %vm822 = vcmask 64512
    %823 = vst.msk [vmem:[%s9] sm:$0xff] %vm822, %v820
    %824 = vst.msk [vmem:[%s9 + $0x8] sm:$0xff] %vm822, %v821
    // Predicated region
    $region50: #{simple_nn_forward.1} parent=1 // pred_check
      _
    $region51: #{simple_nn_forward.1} parent=1 // pred_check_branch
      %826 = sbr.rel (0) target = $region53
    $region52: #{simple_nn_forward.1} parent=1 // pred_region
      _
    $region53: #{simple_nn_forward.1} parent=1 // pred_fallthru
      _
    // Predicated region
    $region54: #{simple_nn_forward.1} parent=1 // pred_check
      _
    $region55: #{simple_nn_forward.1} parent=1 // pred_check_branch
      %828 = sbr.rel (0) target = $region57
    $region56: #{simple_nn_forward.1} parent=1 // pred_region
      _
    $region57: #{simple_nn_forward.1} parent=1 // pred_fallthru
      _
    %829 = vsyncpa [#allocation3], 1
    %830 = vsyncpa [#allocation5], 1

</llo_original>
